<compile_context>
chip_gen: v5e
topology: v5e:2x2
jax: 0.10.0
libtpu: 0.0.40
codegen_flags: <defaults>
</compile_context>

<pallas_src>
import jax
import jax.numpy as jnp
import numpy as np
from jax.experimental import pallas as pl
from jax.experimental.pallas import tpu as pltpu


# ------------------------------------------------------------------ kernel ---
def planner_kernel(x_ref, w1_ref, b1_ref, wf_ref, bf_ref, wh2_ref, bh2_ref,
                   out_ref):
    # fused encoder layer-1 (block-diagonal) + ReLU                  [80, TB]
    h1 = jnp.dot(w1_ref[...], x_ref[...],
                 preferred_element_type=jnp.float32) + b1_ref[...]
    h1 = jnp.maximum(h1, 0.0)

    # folded (encoder layer-2 @ head layer-1) + ReLU                 [128, TB]
    h2 = jnp.dot(wf_ref[...], h1,
                 preferred_element_type=jnp.float32) + bf_ref[...]
    h2 = jnp.maximum(h2, 0.0)

    # fused head layer-2 (block-diagonal)                            [17, TB]
    z = jnp.dot(wh2_ref[...], h2,
                preferred_element_type=jnp.float32) + bh2_ref[...]

    out_ref[...] = z
    # sigmoid only on resource (rows 6:9) + stakeholder (rows 9:13): a cheap
    # sublane slice in the feature-major layout (EUP work ~2.4x smaller than
    # sigmoid over all 17 rows).
    out_ref[pl.ds(6, 7), :] = jax.nn.sigmoid(z[6:13, :])


# ----------------------------------------------------------------- tiling ---
def _round_up(n, m):
    return ((n + m - 1) // m) * m


def _cdiv(a, b):
    return -(-a // b)


def _choose_tiling(B, tile_b=1024, min_steps=4):
    """Pick (TB, B_pad) for the lane (batch) axis of the transposed layout.

    TB is a 128-multiple (256-multiple when it matters, filling the full
    2x256x256 MXU output width on v6e/v7x); tiles are balanced so B just over
    a tile multiple does not double the padding; for large B the grid has at
    least `min_steps` steps so v7x's 2 TensorCores each get >= 2 pipelined
    steps.
    """
    B = max(B, 1)
    if B <= 256:
        tb = _round_up(B, 128)          # tiny batch: one step, minimal padding
        return tb, tb
    n_steps = max(_cdiv(B, tile_b), min_steps)
    tb = _round_up(_cdiv(B, n_steps), 256)
    return tb, _round_up(B, tb)


# ----------------------------------------------------------------- wrapper ---
def planner_forward(x_packed, params, *, tile_b=1024):
    """x_packed: [B, 20] = cat(inc[4], doc[6], res[3], stake[4], prio[3])."""
    B = x_packed.shape[0]
    TB, B_pad = _choose_tiling(B, tile_b)

    # feature-major: batch on the 128-lane axis
    x_t = x_packed.T                                        # [20, B]
    if B_pad != B:
        x_t = jnp.pad(x_t, ((0, 0), (0, B_pad - B)))        # [20, B_pad]

    W1T, B1T, WFT, BFT, WH2T, BH2T = params

    flops = 2 * B_pad * (20 * 80 + 80 * 128 + 128 * 17)
    bytes_accessed = 4 * (B_pad * (20 + 17) + W1T.size + B1T.size + WFT.size
                          + BFT.size + WH2T.size + BH2T.size)
    cost = pl.CostEstimate(flops=flops, transcendentals=7 * B_pad,
                           bytes_accessed=bytes_accessed)

    def run(single_buffer_weights):
        if single_buffer_weights:
            # Resident operands (constant index_map, never re-fetched) only
            # need a single VMEM buffer each.
            res = lambda shp: pl.BlockSpec(shp, lambda i: (0, 0),
                                           pipeline_mode=pl.Buffered(1))
        else:
            res = lambda shp: pl.BlockSpec(shp, lambda i: (0, 0))
        return pl.pallas_call(
            planner_kernel,
            out_shape=jax.ShapeDtypeStruct((17, B_pad), jnp.float32),
            grid=(B_pad // TB,),
            in_specs=[
                pl.BlockSpec((20, TB), lambda i: (0, i)),  # x^T batch tile
                res((80, 20)),     # W1^T  : block-diag encoder layer-1
                res((80, 1)),      # b1
                res((128, 80)),    # WF^T  = (W2 @ WH1)^T  (folded offline)
                res((128, 1)),     # bf    = B2 @ WH1 + BH1
                res((17, 128)),    # WH2^T : block-diag head layer-2
                res((17, 1)),      # bh2
            ],
            out_specs=pl.BlockSpec((17, TB), lambda i: (0, i)),
            compiler_params=pltpu.CompilerParams(
                dimension_semantics=("parallel",)),
            cost_estimate=cost,
        )(x_t, W1T, B1T, WFT, BFT, WH2T, BH2T)

    try:
        z_t = run(True)
    except Exception:
        # pipeline_mode=pl.Buffered(1) unsupported on this jax build ->
        # fall back to default (double-buffered) resident operands.
        z_t = run(False)

    z = z_t[:, :B].T                                        # [B, 17]
    return {
        "action_type": z[:, 0:6],
        "resource_allocation": z[:, 6:9],
        "stakeholder_assignment": z[:, 9:13],
        "timeline": z[:, 13:17],
    }


# --------------------------------------------------------- parameter setup ---
def _linear_init(key, fan_in, fan_out):
    # PyTorch default: U(-1/sqrt(fan_in), 1/sqrt(fan_in)) for weight and bias
    kw, kb = jax.random.split(key)
    bound = 1.0 / np.sqrt(fan_in)
    w = jax.random.uniform(kw, (fan_in, fan_out), jnp.float32, -bound, bound)
    b = jax.random.uniform(kb, (fan_out,), jnp.float32, -bound, bound)
    return w, b


def _block_diag(blocks):
    rows = sum(b.shape[0] for b in blocks)
    cols = sum(b.shape[1] for b in blocks)
    out = np.zeros((rows, cols), np.float64)
    r = c = 0
    for b in blocks:
        out[r:r + b.shape[0], c:c + b.shape[1]] = np.asarray(b, np.float64)
        r += b.shape[0]
        c += b.shape[1]
    return out


def build_params(key):
    # encoder (in, hidden, out) dims, in torch.cat order
    enc_dims = [(4, 16, 8), (6, 24, 12), (3, 12, 6), (4, 16, 8), (3, 12, 6)]
    head_out = [6, 3, 4, 4]   # action_type, resource, stakeholder, timeline

    keys = jax.random.split(key, len(enc_dims) * 2 + len(head_out) * 2)
    ki = iter(keys)

    enc_raw = []
    for (d_in, d_hid, d_out) in enc_dims:
        w1, b1 = _linear_init(next(ki), d_in, d_hid)
        w2, b2 = _linear_init(next(ki), d_hid, d_out)
        enc_raw.append((w1, b1, w2, b2))

    head_raw = []
    for k_out in head_out:
        w1, b1 = _linear_init(next(ki), 40, 32)
        w2, b2 = _linear_init(next(ki), 32, k_out)
        head_raw.append((w1, b1, w2, b2))

    # ---- packed params used by the kernel (fold done in float64 on host) ----
    W1 = _block_diag([e[0] for e in enc_raw])                          # [20,80]
    B1 = np.concatenate([np.asarray(e[1], np.float64)
                         for e in enc_raw])[None, :]                   # [1,80]
    W2 = _block_diag([e[2] for e in enc_raw])                          # [80,40]
    B2 = np.concatenate([np.asarray(e[3], np.float64)
                         for e in enc_raw])[None, :]                   # [1,40]
    WH1 = np.concatenate([np.asarray(h[0], np.float64)
                          for h in head_raw], axis=1)                  # [40,128]
    BH1 = np.concatenate([np.asarray(h[1], np.float64)
                          for h in head_raw])[None, :]                 # [1,128]
    WH2 = _block_diag([h[2] for h in head_raw])                        # [128,17]
    BH2 = np.concatenate([np.asarray(h[3], np.float64)
                          for h in head_raw])[None, :]                 # [1,17]

    WF = W2 @ WH1                       # [80,128]  (no nonlinearity in between)
    BF = B2 @ WH1 + BH1                 # [1,128]

    # kernel consumes the transposed (feature-major) versions
    packed = (jnp.asarray(W1.T, jnp.float32),   # [80, 20]
              jnp.asarray(B1.T, jnp.float32),   # [80, 1]
              jnp.asarray(WF.T, jnp.float32),   # [128, 80]
              jnp.asarray(BF.T, jnp.float32),   # [128, 1]
              jnp.asarray(WH2.T, jnp.float32),  # [17, 128]
              jnp.asarray(BH2.T, jnp.float32))  # [17, 1]
    return packed, enc_raw, head_raw


# ------------------------------------------------------ plain-JAX reference ---
def reference_forward(state, enc_raw, head_raw):
    def mlp(x, w1, b1, w2, b2):
        return jnp.maximum(x @ w1 + b1, 0.0) @ w2 + b2

    feats = [
        mlp(state["inconsistency_type"], *enc_raw[0]),
        mlp(state["document_state"], *enc_raw[1]),
        mlp(state["resources"], *enc_raw[2]),
        mlp(state["stakeholders"], *enc_raw[3]),
        mlp(state["priority"], *enc_raw[4]),
    ]
    combined = jnp.concatenate(feats, axis=-1)
    at = mlp(combined, *head_raw[0])
    ra = jax.nn.sigmoid(mlp(combined, *head_raw[1]))
    sa = jax.nn.sigmoid(mlp(combined, *head_raw[2]))
    tl = mlp(combined, *head_raw[3])
    return {"action_type": at, "resource_allocation": ra,
            "stakeholder_assignment": sa, "timeline": tl}


# ---------------------------------------------------------------------- main --
if __name__ == "__main__":
    key = jax.random.PRNGKey(0)
    k_params, k_inc, k_doc, k_res, k_stk, k_pri = jax.random.split(key, 6)

    B = 8
    state = {
        "inconsistency_type": jax.random.normal(k_inc, (B, 4), jnp.float32),
        "document_state":     jax.random.normal(k_doc, (B, 6), jnp.float32),
        "resources":          jax.random.normal(k_res, (B, 3), jnp.float32),
        "stakeholders":       jax.random.normal(k_stk, (B, 4), jnp.float32),
        "priority":           jax.random.normal(k_pri, (B, 3), jnp.float32),
    }

    packed_params, enc_raw, head_raw = build_params(k_params)

    # pack inputs in torch.cat order: [inc(4), doc(6), res(3), stake(4), prio(3)]
    x_packed = jnp.concatenate(
        [state["inconsistency_type"], state["document_state"],
         state["resources"], state["stakeholders"], state["priority"]],
        axis=-1)                                                    # [B, 20]

    out = planner_forward(x_packed, packed_params)
    jax.block_until_ready(out)

    ref = reference_forward(state, enc_raw, head_raw)
    # W2@WH1 fold (done in f64 on host) changes fp32 rounding slightly vs the
    # two-matmul reference -> compare at 1e-4.
    for k in out:
        np.testing.assert_allclose(np.asarray(out[k]), np.asarray(ref[k]),
                                   rtol=1e-4, atol=1e-4)

    print("KERNEL_OK")
</pallas_src>

<mosaic_0001>
module attributes {stable_mosaic.version = 11 : i64} {
  func.func @planner_kernel(%arg0: i32, %arg1: memref<20x128xf32, #tpu.memory_space<vmem>>, %arg2: memref<80x20xf32, #tpu.memory_space<vmem>>, %arg3: memref<80x1xf32, #tpu.memory_space<vmem>>, %arg4: memref<128x80xf32, #tpu.memory_space<vmem>>, %arg5: memref<128x1xf32, #tpu.memory_space<vmem>>, %arg6: memref<17x128xf32, #tpu.memory_space<vmem>>, %arg7: memref<17x1xf32, #tpu.memory_space<vmem>>, %arg8: memref<17x128xf32, #tpu.memory_space<vmem>>) attributes {dimension_semantics = [#tpu.dimension_semantics<parallel>], iteration_bounds = array<i64: 1>, scalar_prefetch = 0 : i64, scratch_operands = 0 : i64, tpu.core_type = #tpu.core_type<tc>, window_params = [{transform_indices = @transform_0, window_bounds = array<i64: 20, 128>}, {pipeline_mode = #tpu.pipeline_mode<synchronous>, transform_indices = @transform_1, window_bounds = array<i64: 80, 20>}, {pipeline_mode = #tpu.pipeline_mode<synchronous>, transform_indices = @transform_2, window_bounds = array<i64: 80, 1>}, {pipeline_mode = #tpu.pipeline_mode<synchronous>, transform_indices = @transform_3, window_bounds = array<i64: 128, 80>}, {pipeline_mode = #tpu.pipeline_mode<synchronous>, transform_indices = @transform_4, window_bounds = array<i64: 128, 1>}, {pipeline_mode = #tpu.pipeline_mode<synchronous>, transform_indices = @transform_5, window_bounds = array<i64: 17, 128>}, {pipeline_mode = #tpu.pipeline_mode<synchronous>, transform_indices = @transform_6, window_bounds = array<i64: 17, 1>}, {transform_indices = @transform_7, window_bounds = array<i64: 17, 128>}]} {
    %c0 = arith.constant 0 : index
    %c0_0 = arith.constant 0 : index
    %0 = vector.load %arg2[%c0, %c0_0] : memref<80x20xf32, #tpu.memory_space<vmem>>, vector<80x20xf32>
    %c0_1 = arith.constant 0 : index
    %c0_2 = arith.constant 0 : index
    %1 = vector.load %arg1[%c0_1, %c0_2] : memref<20x128xf32, #tpu.memory_space<vmem>>, vector<20x128xf32>
    %cst = arith.constant dense<0.000000e+00> : vector<80x128xf32>
    %2 = tpu.matmul %0, %1, %cst {dimension_numbers = #tpu.dot_dimension_numbers<[1], [0], [0], [1], [0, 0, 1, 1], [], []>} : vector<80x20xf32>, vector<20x128xf32>, vector<80x128xf32> -> vector<80x128xf32>
    %c0_3 = arith.constant 0 : index
    %c0_4 = arith.constant 0 : index
    %3 = vector.load %arg3[%c0_3, %c0_4] : memref<80x1xf32, #tpu.memory_space<vmem>>, vector<80x1xf32>
    %4 = vector.broadcast %3 : vector<80x1xf32> to vector<80x128xf32>
    %5 = arith.addf %2, %4 : vector<80x128xf32>
    %cst_5 = arith.constant 0.000000e+00 : f32
    %6 = vector.broadcast %cst_5 : f32 to vector<80x128xf32>
    %7 = arith.maximumf %5, %6 : vector<80x128xf32>
    %c0_6 = arith.constant 0 : index
    %c0_7 = arith.constant 0 : index
    %8 = vector.load %arg4[%c0_6, %c0_7] : memref<128x80xf32, #tpu.memory_space<vmem>>, vector<128x80xf32>
    %cst_8 = arith.constant dense<0.000000e+00> : vector<128x128xf32>
    %9 = tpu.matmul %8, %7, %cst_8 {dimension_numbers = #tpu.dot_dimension_numbers<[1], [0], [0], [1], [0, 0, 1, 1], [], []>} : vector<128x80xf32>, vector<80x128xf32>, vector<128x128xf32> -> vector<128x128xf32>
    %c0_9 = arith.constant 0 : index
    %c0_10 = arith.constant 0 : index
    %10 = vector.load %arg5[%c0_9, %c0_10] : memref<128x1xf32, #tpu.memory_space<vmem>>, vector<128x1xf32>
    %11 = vector.broadcast %10 : vector<128x1xf32> to vector<128x128xf32>
    %12 = arith.addf %9, %11 : vector<128x128xf32>
    %cst_11 = arith.constant 0.000000e+00 : f32
    %13 = vector.broadcast %cst_11 : f32 to vector<128x128xf32>
    %14 = arith.maximumf %12, %13 : vector<128x128xf32>
    %c0_12 = arith.constant 0 : index
    %c0_13 = arith.constant 0 : index
    %15 = vector.load %arg6[%c0_12, %c0_13] : memref<17x128xf32, #tpu.memory_space<vmem>>, vector<17x128xf32>
    %cst_14 = arith.constant dense<0.000000e+00> : vector<17x128xf32>
    %16 = tpu.matmul %15, %14, %cst_14 {dimension_numbers = #tpu.dot_dimension_numbers<[1], [0], [0], [1], [0, 0, 1, 1], [], []>} : vector<17x128xf32>, vector<128x128xf32>, vector<17x128xf32> -> vector<17x128xf32>
    %c0_15 = arith.constant 0 : index
    %c0_16 = arith.constant 0 : index
    %17 = vector.load %arg7[%c0_15, %c0_16] : memref<17x1xf32, #tpu.memory_space<vmem>>, vector<17x1xf32>
    %18 = vector.broadcast %17 : vector<17x1xf32> to vector<17x128xf32>
    %19 = arith.addf %16, %18 : vector<17x128xf32>
    %c0_17 = arith.constant 0 : index
    %c0_18 = arith.constant 0 : index
    %20 = vector.load %arg8[%c0_17, %c0_18] : memref<17x128xf32, #tpu.memory_space<vmem>>, vector<17x128xf32>
    tpu.vector_store %arg8[%c0_17, %c0_18], %19 {strides = array<i32>} : memref<17x128xf32, #tpu.memory_space<vmem>>, vector<17x128xf32>,
    %21 = vector.extract_strided_slice %19 {offsets = [6, 0], sizes = [7, 128], strides = [1, 1]} : vector<17x128xf32> to vector<7x128xf32>
    %22 = arith.negf %21 : vector<7x128xf32>
    %23 = math.exp %22 : vector<7x128xf32>
    %cst_19 = arith.constant 1.000000e+00 : f32
    %24 = vector.broadcast %cst_19 : f32 to vector<7x128xf32>
    %25 = arith.addf %24, %23 : vector<7x128xf32>
    %26 = arith.divf %24, %25 : vector<7x128xf32>
    %c6 = arith.constant 6 : index
    %c0_20 = arith.constant 0 : index
    %27 = vector.load %arg8[%c6, %c0_20] : memref<17x128xf32, #tpu.memory_space<vmem>>, vector<7x128xf32>
    tpu.vector_store %arg8[%c6, %c0_20], %26 {strides = array<i32>} : memref<17x128xf32, #tpu.memory_space<vmem>>, vector<7x128xf32>,
    return
  }
  func.func @transform_0(%arg0: i32) -> (i32, i32) {
    %c0_i32 = arith.constant 0 : i32
    %c0_i32_0 = arith.constant 0 : i32
    return %c0_i32, %arg0 : i32, i32
  }
  func.func @transform_1(%arg0: i32) -> (i32, i32) {
    %c0_i32 = arith.constant 0 : i32
    %c0_i32_0 = arith.constant 0 : i32
    %c0_i32_1 = arith.constant 0 : i32
    return %c0_i32, %c0_i32_0 : i32, i32
  }
  func.func @transform_2(%arg0: i32) -> (i32, i32) {
    %c0_i32 = arith.constant 0 : i32
    %c0_i32_0 = arith.constant 0 : i32
    %c0_i32_1 = arith.constant 0 : i32
    return %c0_i32, %c0_i32_0 : i32, i32
  }
  func.func @transform_3(%arg0: i32) -> (i32, i32) {
    %c0_i32 = arith.constant 0 : i32
    %c0_i32_0 = arith.constant 0 : i32
    %c0_i32_1 = arith.constant 0 : i32
    return %c0_i32, %c0_i32_0 : i32, i32
  }
  func.func @transform_4(%arg0: i32) -> (i32, i32) {
    %c0_i32 = arith.constant 0 : i32
    %c0_i32_0 = arith.constant 0 : i32
    %c0_i32_1 = arith.constant 0 : i32
    return %c0_i32, %c0_i32_0 : i32, i32
  }
  func.func @transform_5(%arg0: i32) -> (i32, i32) {
    %c0_i32 = arith.constant 0 : i32
    %c0_i32_0 = arith.constant 0 : i32
    %c0_i32_1 = arith.constant 0 : i32
    return %c0_i32, %c0_i32_0 : i32, i32
  }
  func.func @transform_6(%arg0: i32) -> (i32, i32) {
    %c0_i32 = arith.constant 0 : i32
    %c0_i32_0 = arith.constant 0 : i32
    %c0_i32_1 = arith.constant 0 : i32
    return %c0_i32, %c0_i32_0 : i32, i32
  }
  func.func @transform_7(%arg0: i32) -> (i32, i32) {
    %c0_i32 = arith.constant 0 : i32
    %c0_i32_0 = arith.constant 0 : i32
    return %c0_i32, %arg0 : i32, i32
  }
}

module attributes {stable_mosaic.version = 11 : i64} {
  func.func @planner_kernel(%arg0: i32, %arg1: memref<20x128xf32, #tpu.memory_space<vmem>>, %arg2: memref<80x20xf32, #tpu.memory_space<vmem>>, %arg3: memref<80x1xf32, #tpu.memory_space<vmem>>, %arg4: memref<128x80xf32, #tpu.memory_space<vmem>>, %arg5: memref<128x1xf32, #tpu.memory_space<vmem>>, %arg6: memref<17x128xf32, #tpu.memory_space<vmem>>, %arg7: memref<17x1xf32, #tpu.memory_space<vmem>>, %arg8: memref<17x128xf32, #tpu.memory_space<vmem>>) attributes {dimension_semantics = [#tpu.dimension_semantics<parallel>], iteration_bounds = array<i64: 1>, scalar_prefetch = 0 : i64, scratch_operands = 0 : i64, tpu.core_type = #tpu.core_type<tc>, window_params = [{transform_indices = @transform_0, window_bounds = array<i64: 20, 128>}, {pipeline_mode = #tpu.pipeline_mode<synchronous>, transform_indices = @transform_1, window_bounds = array<i64: 80, 20>}, {pipeline_mode = #tpu.pipeline_mode<synchronous>, transform_indices = @transform_2, window_bounds = array<i64: 80, 1>}, {pipeline_mode = #tpu.pipeline_mode<synchronous>, transform_indices = @transform_3, window_bounds = array<i64: 128, 80>}, {pipeline_mode = #tpu.pipeline_mode<synchronous>, transform_indices = @transform_4, window_bounds = array<i64: 128, 1>}, {pipeline_mode = #tpu.pipeline_mode<synchronous>, transform_indices = @transform_5, window_bounds = array<i64: 17, 128>}, {pipeline_mode = #tpu.pipeline_mode<synchronous>, transform_indices = @transform_6, window_bounds = array<i64: 17, 1>}, {transform_indices = @transform_7, window_bounds = array<i64: 17, 128>}]} {
    %c0 = arith.constant 0 : index
    %c0_0 = arith.constant 0 : index
    %0 = vector.load %arg2[%c0, %c0_0] : memref<80x20xf32, #tpu.memory_space<vmem>>, vector<80x20xf32>
    %c0_1 = arith.constant 0 : index
    %c0_2 = arith.constant 0 : index
    %1 = vector.load %arg1[%c0_1, %c0_2] : memref<20x128xf32, #tpu.memory_space<vmem>>, vector<20x128xf32>
    %cst = arith.constant dense<0.000000e+00> : vector<80x128xf32>
    %2 = tpu.matmul %0, %1, %cst {dimension_numbers = #tpu.dot_dimension_numbers<[1], [0], [0], [1], [0, 0, 1, 1], [], []>} : vector<80x20xf32>, vector<20x128xf32>, vector<80x128xf32> -> vector<80x128xf32>
    %c0_3 = arith.constant 0 : index
    %c0_4 = arith.constant 0 : index
    %3 = vector.load %arg3[%c0_3, %c0_4] : memref<80x1xf32, #tpu.memory_space<vmem>>, vector<80x1xf32>
    %4 = vector.broadcast %3 : vector<80x1xf32> to vector<80x128xf32>
    %5 = arith.addf %2, %4 : vector<80x128xf32>
    %cst_5 = arith.constant 0.000000e+00 : f32
    %6 = vector.broadcast %cst_5 : f32 to vector<80x128xf32>
    %7 = arith.maximumf %5, %6 : vector<80x128xf32>
    %c0_6 = arith.constant 0 : index
    %c0_7 = arith.constant 0 : index
    %8 = vector.load %arg4[%c0_6, %c0_7] : memref<128x80xf32, #tpu.memory_space<vmem>>, vector<128x80xf32>
    %cst_8 = arith.constant dense<0.000000e+00> : vector<128x128xf32>
    %9 = tpu.matmul %8, %7, %cst_8 {dimension_numbers = #tpu.dot_dimension_numbers<[1], [0], [0], [1], [0, 0, 1, 1], [], []>} : vector<128x80xf32>, vector<80x128xf32>, vector<128x128xf32> -> vector<128x128xf32>
    %c0_9 = arith.constant 0 : index
    %c0_10 = arith.constant 0 : index
    %10 = vector.load %arg5[%c0_9, %c0_10] : memref<128x1xf32, #tpu.memory_space<vmem>>, vector<128x1xf32>
    %11 = vector.broadcast %10 : vector<128x1xf32> to vector<128x128xf32>
    %12 = arith.addf %9, %11 : vector<128x128xf32>
    %cst_11 = arith.constant 0.000000e+00 : f32
    %13 = vector.broadcast %cst_11 : f32 to vector<128x128xf32>
    %14 = arith.maximumf %12, %13 : vector<128x128xf32>
    %c0_12 = arith.constant 0 : index
    %c0_13 = arith.constant 0 : index
    %15 = vector.load %arg6[%c0_12, %c0_13] : memref<17x128xf32, #tpu.memory_space<vmem>>, vector<17x128xf32>
    %cst_14 = arith.constant dense<0.000000e+00> : vector<17x128xf32>
    %16 = tpu.matmul %15, %14, %cst_14 {dimension_numbers = #tpu.dot_dimension_numbers<[1], [0], [0], [1], [0, 0, 1, 1], [], []>} : vector<17x128xf32>, vector<128x128xf32>, vector<17x128xf32> -> vector<17x128xf32>
    %c0_15 = arith.constant 0 : index
    %c0_16 = arith.constant 0 : index
    %17 = vector.load %arg7[%c0_15, %c0_16] : memref<17x1xf32, #tpu.memory_space<vmem>>, vector<17x1xf32>
    %18 = vector.broadcast %17 : vector<17x1xf32> to vector<17x128xf32>
    %19 = arith.addf %16, %18 : vector<17x128xf32>
    %c0_17 = arith.constant 0 : index
    %c0_18 = arith.constant 0 : index
    %20 = vector.load %arg8[%c0_17, %c0_18] : memref<17x128xf32, #tpu.memory_space<vmem>>, vector<17x128xf32>
    tpu.vector_store %arg8[%c0_17, %c0_18], %19 {strides = array<i32>} : memref<17x128xf32, #tpu.memory_space<vmem>>, vector<17x128xf32>,
    %21 = vector.extract_strided_slice %19 {offsets = [6, 0], sizes = [7, 128], strides = [1, 1]} : vector<17x128xf32> to vector<7x128xf32>
    %22 = arith.negf %21 : vector<7x128xf32>
    %23 = math.exp %22 : vector<7x128xf32>
    %cst_19 = arith.constant 1.000000e+00 : f32
    %24 = vector.broadcast %cst_19 : f32 to vector<7x128xf32>
    %25 = arith.addf %24, %23 : vector<7x128xf32>
    %26 = arith.divf %24, %25 : vector<7x128xf32>
    %c6 = arith.constant 6 : index
    %c0_20 = arith.constant 0 : index
    %27 = vector.load %arg8[%c6, %c0_20] : memref<17x128xf32, #tpu.memory_space<vmem>>, vector<7x128xf32>
    tpu.vector_store %arg8[%c6, %c0_20], %26 {strides = array<i32>} : memref<17x128xf32, #tpu.memory_space<vmem>>, vector<7x128xf32>,
    return
  }
  func.func @transform_0(%arg0: i32) -> (i32, i32) {
    %c0_i32 = arith.constant 0 : i32
    %c0_i32_0 = arith.constant 0 : i32
    return %c0_i32, %arg0 : i32, i32
  }
  func.func @transform_1(%arg0: i32) -> (i32, i32) {
    %c0_i32 = arith.constant 0 : i32
    %c0_i32_0 = arith.constant 0 : i32
    %c0_i32_1 = arith.constant 0 : i32
    return %c0_i32, %c0_i32_0 : i32, i32
  }
  func.func @transform_2(%arg0: i32) -> (i32, i32) {
    %c0_i32 = arith.constant 0 : i32
    %c0_i32_0 = arith.constant 0 : i32
    %c0_i32_1 = arith.constant 0 : i32
    return %c0_i32, %c0_i32_0 : i32, i32
  }
  func.func @transform_3(%arg0: i32) -> (i32, i32) {
    %c0_i32 = arith.constant 0 : i32
    %c0_i32_0 = arith.constant 0 : i32
    %c0_i32_1 = arith.constant 0 : i32
    return %c0_i32, %c0_i32_0 : i32, i32
  }
  func.func @transform_4(%arg0: i32) -> (i32, i32) {
    %c0_i32 = arith.constant 0 : i32
    %c0_i32_0 = arith.constant 0 : i32
    %c0_i32_1 = arith.constant 0 : i32
    return %c0_i32, %c0_i32_0 : i32, i32
  }
  func.func @transform_5(%arg0: i32) -> (i32, i32) {
    %c0_i32 = arith.constant 0 : i32
    %c0_i32_0 = arith.constant 0 : i32
    %c0_i32_1 = arith.constant 0 : i32
    return %c0_i32, %c0_i32_0 : i32, i32
  }
  func.func @transform_6(%arg0: i32) -> (i32, i32) {
    %c0_i32 = arith.constant 0 : i32
    %c0_i32_0 = arith.constant 0 : i32
    %c0_i32_1 = arith.constant 0 : i32
    return %c0_i32, %c0_i32_0 : i32, i32
  }
  func.func @transform_7(%arg0: i32) -> (i32, i32) {
    %c0_i32 = arith.constant 0 : i32
    %c0_i32_0 = arith.constant 0 : i32
    return %c0_i32, %arg0 : i32, i32
  }
}

</mosaic_0001>

<llo_original>
// kernel: tpu_custom_call.1
$region0: #{tpu_custom_call.1}
  #allocation0 [shape = 'u32[]', space=smem, size = 0x4, offset = 0x4, fixed_abs, tag = 'smem constant byte address 0x4 - core index']
  #allocation1 [shape = 'u32[72,128]{1,0:T(1,128)}', space=vmem, size = 0x9000, scoped, tag = 'internal scratch']
  %s0 = inlined_call_operand.vmem [shape: f32[20,128], index: 0, kind: input, shape index: {}]
  %s1 = inlined_call_operand.vmem [shape: f32[80,20], index: 1, kind: input, shape index: {}]
  %s2 = inlined_call_operand.vmem [shape: f32[80,1], index: 2, kind: input, shape index: {}]
  %s3 = inlined_call_operand.vmem [shape: f32[128,80], index: 3, kind: input, shape index: {}]
  %s4 = inlined_call_operand.vmem [shape: f32[128,1], index: 4, kind: input, shape index: {}]
  %s5 = inlined_call_operand.vmem [shape: f32[17,128], index: 5, kind: input, shape index: {}]
  %s6 = inlined_call_operand.vmem [shape: f32[17,1], index: 6, kind: input, shape index: {}]
  %s7 = inlined_call_operand.hbm [shape: f32[17,128], index: 7, kind: output, shape index: {}]
  %s8 = sld [smem:[#allocation0]]
  $region38: #{tpu_custom_call.1} parent=0
    _
  %s10 = ssub.s32 1, %s8
  %s11 = scalar_select 0, %s10, %s8
  $region1: #{tpu_custom_call.1} parent=0
    #allocation2 [shape = 'u8[12288]{0}', space=vmem, size = 0x3000, scoped, tag = 'output window, operand 0, single buffered']
    #allocation3 [shape = 's32[1]{0}', space=sflag, size = 0x4, scoped, tag = 'scoped memory for tpu_custom_call.1']
    %12 = vsyncpa [#allocation3], 0
    // Predicated region
    $region2: #{tpu_custom_call.1} parent=1 // pred_check
      _
    $region3: #{tpu_custom_call.1} parent=1 // pred_check_branch
      %14 = sbr.rel (0) target = $region5
    $region4: #{tpu_custom_call.1} parent=1 // pred_region
      _
    $region5: #{tpu_custom_call.1} parent=1 // pred_fallthru
      _
    // Predicated region
    $region6: #{tpu_custom_call.1} parent=1 // pred_check
      _
    $region7: #{tpu_custom_call.1} parent=1 // pred_check_branch
      %16 = sbr.rel (0) target = $region9
    $region8: #{tpu_custom_call.1} parent=1 // pred_region
      _
    $region9: #{tpu_custom_call.1} parent=1 // pred_fallthru
      _
    // Predicated region
    $region10: #{tpu_custom_call.1} parent=1 // pred_check
      _
    $region11: #{tpu_custom_call.1} parent=1 // pred_check_branch
      %18 = sbr.rel (0) target = $region13
    $region12: #{tpu_custom_call.1} parent=1 // pred_region
      _
    $region13: #{tpu_custom_call.1} parent=1 // pred_fallthru
      _
    // Predicated region
    $region14: #{tpu_custom_call.1} parent=1 // pred_check
      _
    $region15: #{tpu_custom_call.1} parent=1 // pred_check_branch
      %20 = sbr.rel (0) target = $region17
    $region16: #{tpu_custom_call.1} parent=1 // pred_region
      _
    $region17: #{tpu_custom_call.1} parent=1 // pred_fallthru
      _
    // Predicated region
    $region18: #{tpu_custom_call.1} parent=1 // pred_check
      _
    $region19: #{tpu_custom_call.1} parent=1 // pred_check_branch
      %22 = sbr.rel (0) target = $region21
    $region20: #{tpu_custom_call.1} parent=1 // pred_region
      _
    $region21: #{tpu_custom_call.1} parent=1 // pred_fallthru
      _
    // Predicated region
    $region22: #{tpu_custom_call.1} parent=1 // pred_check
      _
    $region23: #{tpu_custom_call.1} parent=1 // pred_check_branch
      %24 = sbr.rel (0) target = $region25
    $region24: #{tpu_custom_call.1} parent=1 // pred_region
      _
    $region25: #{tpu_custom_call.1} parent=1 // pred_fallthru
      _
    // Predicated region
    $region26: #{tpu_custom_call.1} parent=1 // pred_check
      _
    $region27: #{tpu_custom_call.1} parent=1 // pred_check_branch
      %26 = sbr.rel (0) target = $region29
    $region28: #{tpu_custom_call.1} parent=1 // pred_region
      _
    $region29: #{tpu_custom_call.1} parent=1 // pred_fallthru
      _
    %v27 = vld [vmem:[%s1] sm:$0xff]
    %v28 = vld [vmem:[%s1 + $0x8] sm:$0xff]
    %v29 = vld [vmem:[%s1 + $0x10] sm:$0xff]
    %v30 = vld [vmem:[%s1 + $0x18] sm:$0xff]
    %v31 = vld [vmem:[%s1 + $0x20] sm:$0xff]
    %v32 = vld [vmem:[%s1 + $0x28] sm:$0xff]
    %v33 = vld [vmem:[%s1 + $0x30] sm:$0xff]
    %v34 = vld [vmem:[%s1 + $0x38] sm:$0xff]
    %v35 = vld [vmem:[%s1 + $0x40] sm:$0xff]
    %v36 = vld [vmem:[%s1 + $0x48] sm:$0xff]
    %v37 = vld [vmem:[%s0] sm:$0xff]
    %v38 = vld [vmem:[%s0 + $0x8] sm:$0xff]
    %v39 = vld [vmem:[%s0 + $0x10] sm:$0xf]
    %v40 = vld [vmem:[%s2] sm:$0xff]
    %v41 = vld [vmem:[%s2 + $0x8] sm:$0xff]
    %v42 = vld [vmem:[%s2 + $0x10] sm:$0xff]
    %v43 = vld [vmem:[%s2 + $0x18] sm:$0xff]
    %v44 = vld [vmem:[%s2 + $0x20] sm:$0xff]
    %v45 = vld [vmem:[%s2 + $0x28] sm:$0xff]
    %v46 = vld [vmem:[%s2 + $0x30] sm:$0xff]
    %v47 = vld [vmem:[%s2 + $0x38] sm:$0xff]
    %v48 = vld [vmem:[%s2 + $0x40] sm:$0xff]
    %v49 = vld [vmem:[%s2 + $0x48] sm:$0xff]
    %51 = vset.pattern.permute.xlu0 0
    %52 = vperm.xlu0 %51, %v40
    %v53 = vpop.permute.xlu0 %52
    %56 = vset.pattern.permute.xlu0 0
    %57 = vperm.xlu0 %56, %v41
    %v58 = vpop.permute.xlu0 %57
    %61 = vset.pattern.permute.xlu0 0
    %62 = vperm.xlu0 %61, %v42
    %v63 = vpop.permute.xlu0 %62
    %66 = vset.pattern.permute.xlu0 0
    %67 = vperm.xlu0 %66, %v43
    %v68 = vpop.permute.xlu0 %67
    %71 = vset.pattern.permute.xlu0 0
    %72 = vperm.xlu0 %71, %v44
    %v73 = vpop.permute.xlu0 %72
    %76 = vset.pattern.permute.xlu0 0
    %77 = vperm.xlu0 %76, %v45
    %v78 = vpop.permute.xlu0 %77
    %81 = vset.pattern.permute.xlu0 0
    %82 = vperm.xlu0 %81, %v46
    %v83 = vpop.permute.xlu0 %82
    %86 = vset.pattern.permute.xlu0 0
    %87 = vperm.xlu0 %86, %v47
    %v88 = vpop.permute.xlu0 %87
    %91 = vset.pattern.permute.xlu0 0
    %92 = vperm.xlu0 %91, %v48
    %v93 = vpop.permute.xlu0 %92
    %96 = vset.pattern.permute.xlu0 0
    %97 = vperm.xlu0 %96, %v49
    %v98 = vpop.permute.xlu0 %97
    %vm100 = vcmask 162816
    %v102 = vsel %vm100, %v27, 0
    %v105 = vsel %vm100, %v28, 0
    %v108 = vsel %vm100, %v29, 0
    %v111 = vsel %vm100, %v30, 0
    %v114 = vsel %vm100, %v31, 0
    %v117 = vsel %vm100, %v32, 0
    %v120 = vsel %vm100, %v33, 0
    %v123 = vsel %vm100, %v34, 0
    %v126 = vsel %vm100, %v35, 0
    %v129 = vsel %vm100, %v36, 0
    %vm131 = vcmask 1043456
    %v133 = vsel %vm131, %v39, 0
    %135 = vmatpush.msra.mxu0 0.0
    %136 = vmatpush.msra.mxu0 0.0
    %137 = vmatpush.msra.mxu0 0.0
    %138 = vmatpush.msra.mxu0 0.0
    %139 = vmatpush.msra.mxu0 0.0
    %140 = vmatpush.msra.mxu0 0.0
    %141 = vmatpush.msra.mxu0 0.0
    %142 = vmatpush.msra.mxu0 0.0
    %143 = vmatpush.msra.mxu0 0.0
    %144 = vmatpush.msra.mxu0 0.0
    %145 = vmatpush.msra.mxu0 0.0
    %146 = vmatpush.msra.mxu0 0.0
    %147 = vmatpush.msra.mxu0 0.0
    %148 = vmatpush.msra.mxu0 %v133
    %149 = vmatpush.msra.mxu0 %v38
    %150 = vmatpush.msra.mxu0 %v37
    %151 = vmatmul.f32.gmra.mxu0 %v102
    %v152 = vpop.f32.mrf.mxu0
    %v153 = vadd.f32 %v53, %v152
    %154 = vmatmul.f32.gmra.mxu0 %v105
    %v155 = vpop.f32.mrf.mxu0
    %v156 = vadd.f32 %v58, %v155
    %157 = vmatmul.f32.gmra.mxu0 %v108
    %v158 = vpop.f32.mrf.mxu0
    %v159 = vadd.f32 %v63, %v158
    %160 = vmatmul.f32.gmra.mxu0 %v111
    %v161 = vpop.f32.mrf.mxu0
    %v162 = vadd.f32 %v68, %v161
    %163 = vmatmul.f32.gmra.mxu0 %v114
    %v164 = vpop.f32.mrf.mxu0
    %v165 = vadd.f32 %v73, %v164
    %166 = vmatmul.f32.gmra.mxu0 %v117
    %v167 = vpop.f32.mrf.mxu0
    %v168 = vadd.f32 %v78, %v167
    %169 = vmatmul.f32.gmra.mxu0 %v120
    %v170 = vpop.f32.mrf.mxu0
    %v171 = vadd.f32 %v83, %v170
    %172 = vmatmul.f32.gmra.mxu0 %v123
    %v173 = vpop.f32.mrf.mxu0
    %v174 = vadd.f32 %v88, %v173
    %175 = vmatmul.f32.gmra.mxu0 %v126
    %v176 = vpop.f32.mrf.mxu0
    %v177 = vadd.f32 %v93, %v176
    %178 = vmatmul.f32.gmra.mxu0 %v129
    %v179 = vpop.f32.mrf.mxu0
    %v180 = vadd.f32 %v98, %v179
    %181 = vdwg.mxu0
    %v182 = vmax.f32 %v153, 0.0
    %v183 = vmax.f32 %v156, 0.0
    %v184 = vmax.f32 %v159, 0.0
    %v185 = vmax.f32 %v162, 0.0
    %v186 = vmax.f32 %v165, 0.0
    %v187 = vmax.f32 %v168, 0.0
    %v188 = vmax.f32 %v171, 0.0
    %v189 = vmax.f32 %v174, 0.0
    %v190 = vmax.f32 %v177, 0.0
    %v191 = vmax.f32 %v180, 0.0
    %v192 = vld [vmem:[%s3] sm:$0xff]
    %v193 = vld [vmem:[%s3 + $0x8] sm:$0xff]
    %v194 = vld [vmem:[%s3 + $0x10] sm:$0xff]
    %v195 = vld [vmem:[%s3 + $0x18] sm:$0xff]
    %v196 = vld [vmem:[%s3 + $0x20] sm:$0xff]
    %v197 = vld [vmem:[%s3 + $0x28] sm:$0xff]
    %v198 = vld [vmem:[%s3 + $0x30] sm:$0xff]
    %v199 = vld [vmem:[%s3 + $0x38] sm:$0xff]
    %v200 = vld [vmem:[%s3 + $0x40] sm:$0xff]
    %v201 = vld [vmem:[%s3 + $0x48] sm:$0xff]
    %v202 = vld [vmem:[%s3 + $0x50] sm:$0xff]
    %v203 = vld [vmem:[%s3 + $0x58] sm:$0xff]
    %v204 = vld [vmem:[%s3 + $0x60] sm:$0xff]
    %v205 = vld [vmem:[%s3 + $0x68] sm:$0xff]
    %v206 = vld [vmem:[%s3 + $0x70] sm:$0xff]
    %v207 = vld [vmem:[%s3 + $0x78] sm:$0xff]
    %v208 = vld [vmem:[%s4] sm:$0xff]
    %v209 = vld [vmem:[%s4 + $0x8] sm:$0xff]
    %v210 = vld [vmem:[%s4 + $0x10] sm:$0xff]
    %v211 = vld [vmem:[%s4 + $0x18] sm:$0xff]
    %v212 = vld [vmem:[%s4 + $0x20] sm:$0xff]
    %v213 = vld [vmem:[%s4 + $0x28] sm:$0xff]
    %v214 = vld [vmem:[%s4 + $0x30] sm:$0xff]
    %v215 = vld [vmem:[%s4 + $0x38] sm:$0xff]
    %v216 = vld [vmem:[%s4 + $0x40] sm:$0xff]
    %v217 = vld [vmem:[%s4 + $0x48] sm:$0xff]
    %v218 = vld [vmem:[%s4 + $0x50] sm:$0xff]
    %v219 = vld [vmem:[%s4 + $0x58] sm:$0xff]
    %v220 = vld [vmem:[%s4 + $0x60] sm:$0xff]
    %v221 = vld [vmem:[%s4 + $0x68] sm:$0xff]
    %v222 = vld [vmem:[%s4 + $0x70] sm:$0xff]
    %v223 = vld [vmem:[%s4 + $0x78] sm:$0xff]
    %225 = vset.pattern.permute.xlu0 0
    %226 = vperm.xlu0 %225, %v208
    %v227 = vpop.permute.xlu0 %226
    %230 = vset.pattern.permute.xlu0 0
    %231 = vperm.xlu0 %230, %v209
    %v232 = vpop.permute.xlu0 %231
    %235 = vset.pattern.permute.xlu0 0
    %236 = vperm.xlu0 %235, %v210
    %v237 = vpop.permute.xlu0 %236
    %240 = vset.pattern.permute.xlu0 0
    %241 = vperm.xlu0 %240, %v211
    %v242 = vpop.permute.xlu0 %241
    %245 = vset.pattern.permute.xlu0 0
    %246 = vperm.xlu0 %245, %v212
    %v247 = vpop.permute.xlu0 %246
    %250 = vset.pattern.permute.xlu0 0
    %251 = vperm.xlu0 %250, %v213
    %v252 = vpop.permute.xlu0 %251
    %255 = vset.pattern.permute.xlu0 0
    %256 = vperm.xlu0 %255, %v214
    %v257 = vpop.permute.xlu0 %256
    %260 = vset.pattern.permute.xlu0 0
    %261 = vperm.xlu0 %260, %v215
    %v262 = vpop.permute.xlu0 %261
    %265 = vset.pattern.permute.xlu0 0
    %266 = vperm.xlu0 %265, %v216
    %v267 = vpop.permute.xlu0 %266
    %270 = vset.pattern.permute.xlu0 0
    %271 = vperm.xlu0 %270, %v217
    %v272 = vpop.permute.xlu0 %271
    %275 = vset.pattern.permute.xlu0 0
    %276 = vperm.xlu0 %275, %v218
    %v277 = vpop.permute.xlu0 %276
    %280 = vset.pattern.permute.xlu0 0
    %281 = vperm.xlu0 %280, %v219
    %v282 = vpop.permute.xlu0 %281
    %285 = vset.pattern.permute.xlu0 0
    %286 = vperm.xlu0 %285, %v220
    %v287 = vpop.permute.xlu0 %286
    %290 = vset.pattern.permute.xlu0 0
    %291 = vperm.xlu0 %290, %v221
    %v292 = vpop.permute.xlu0 %291
    %295 = vset.pattern.permute.xlu0 0
    %296 = vperm.xlu0 %295, %v222
    %v297 = vpop.permute.xlu0 %296
    %300 = vset.pattern.permute.xlu0 0
    %301 = vperm.xlu0 %300, %v223
    %v302 = vpop.permute.xlu0 %301
    %vm304 = vcmask 654336
    %v306 = vsel %vm304, %v192, 0
    %v309 = vsel %vm304, %v193, 0
    %v312 = vsel %vm304, %v194, 0
    %v315 = vsel %vm304, %v195, 0
    %v318 = vsel %vm304, %v196, 0
    %v321 = vsel %vm304, %v197, 0
    %v324 = vsel %vm304, %v198, 0
    %v327 = vsel %vm304, %v199, 0
    %v330 = vsel %vm304, %v200, 0
    %v333 = vsel %vm304, %v201, 0
    %v336 = vsel %vm304, %v202, 0
    %v339 = vsel %vm304, %v203, 0
    %v342 = vsel %vm304, %v204, 0
    %v345 = vsel %vm304, %v205, 0
    %v348 = vsel %vm304, %v206, 0
    %v351 = vsel %vm304, %v207, 0
    %353 = vmatpush.msra.mxu0 0.0
    %354 = vmatpush.msra.mxu0 0.0
    %355 = vmatpush.msra.mxu0 0.0
    %356 = vmatpush.msra.mxu0 0.0
    %357 = vmatpush.msra.mxu0 0.0
    %358 = vmatpush.msra.mxu0 0.0
    %359 = vmatpush.msra.mxu0 %v191
    %360 = vmatpush.msra.mxu0 %v190
    %361 = vmatpush.msra.mxu0 %v189
    %362 = vmatpush.msra.mxu0 %v188
    %363 = vmatpush.msra.mxu0 %v187
    %364 = vmatpush.msra.mxu0 %v186
    %365 = vmatpush.msra.mxu0 %v185
    %366 = vmatpush.msra.mxu0 %v184
    %367 = vmatpush.msra.mxu0 %v183
    %368 = vmatpush.msra.mxu0 %v182
    %369 = vmatmul.f32.gmra.mxu0 %v306
    %v370 = vpop.f32.mrf.mxu0
    %v371 = vadd.f32 %v227, %v370
    %372 = vmatmul.f32.gmra.mxu0 %v309
    %v373 = vpop.f32.mrf.mxu0
    %v374 = vadd.f32 %v232, %v373
    %375 = vmatmul.f32.gmra.mxu0 %v312
    %v376 = vpop.f32.mrf.mxu0
    %v377 = vadd.f32 %v237, %v376
    %378 = vmatmul.f32.gmra.mxu0 %v315
    %v379 = vpop.f32.mrf.mxu0
    %v380 = vadd.f32 %v242, %v379
    %381 = vmatmul.f32.gmra.mxu0 %v318
    %v382 = vpop.f32.mrf.mxu0
    %v383 = vadd.f32 %v247, %v382
    %384 = vmatmul.f32.gmra.mxu0 %v321
    %v385 = vpop.f32.mrf.mxu0
    %v386 = vadd.f32 %v252, %v385
    %387 = vmatmul.f32.gmra.mxu0 %v324
    %v388 = vpop.f32.mrf.mxu0
    %v389 = vadd.f32 %v257, %v388
    %390 = vmatmul.f32.gmra.mxu0 %v327
    %v391 = vpop.f32.mrf.mxu0
    %v392 = vadd.f32 %v262, %v391
    %393 = vmatmul.f32.gmra.mxu0 %v330
    %v394 = vpop.f32.mrf.mxu0
    %v395 = vadd.f32 %v267, %v394
    %396 = vmatmul.f32.gmra.mxu0 %v333
    %v397 = vpop.f32.mrf.mxu0
    %v398 = vadd.f32 %v272, %v397
    %399 = vmatmul.f32.gmra.mxu0 %v336
    %v400 = vpop.f32.mrf.mxu0
    %v401 = vadd.f32 %v277, %v400
    %402 = vmatmul.f32.gmra.mxu0 %v339
    %v403 = vpop.f32.mrf.mxu0
    %v404 = vadd.f32 %v282, %v403
    %405 = vmatmul.f32.gmra.mxu0 %v342
    %v406 = vpop.f32.mrf.mxu0
    %v407 = vadd.f32 %v287, %v406
    %408 = vmatmul.f32.gmra.mxu0 %v345
    %v409 = vpop.f32.mrf.mxu0
    %v410 = vadd.f32 %v292, %v409
    %411 = vmatmul.f32.gmra.mxu0 %v348
    %v412 = vpop.f32.mrf.mxu0
    %v413 = vadd.f32 %v297, %v412
    %414 = vmatmul.f32.gmra.mxu0 %v351
    %v415 = vpop.f32.mrf.mxu0
    %v416 = vadd.f32 %v302, %v415
    %417 = vdwg.mxu0
    %v418 = vmax.f32 %v371, 0.0
    %v419 = vmax.f32 %v374, 0.0
    %v420 = vmax.f32 %v377, 0.0
    %v421 = vmax.f32 %v380, 0.0
    %v422 = vmax.f32 %v383, 0.0
    %v423 = vmax.f32 %v386, 0.0
    %v424 = vmax.f32 %v389, 0.0
    %v425 = vmax.f32 %v392, 0.0
    %v426 = vmax.f32 %v395, 0.0
    %v427 = vmax.f32 %v398, 0.0
    %v428 = vmax.f32 %v401, 0.0
    %v429 = vmax.f32 %v404, 0.0
    %v430 = vmax.f32 %v407, 0.0
    %v431 = vmax.f32 %v410, 0.0
    %v432 = vmax.f32 %v413, 0.0
    %v433 = vmax.f32 %v416, 0.0
    %v434 = vld [vmem:[%s5] sm:$0xff]
    %v435 = vld [vmem:[%s5 + $0x8] sm:$0xff]
    %v436 = vld [vmem:[%s5 + $0x10] sm:$0x1]
    %v437 = vld [vmem:[%s6] sm:$0xff]
    %v438 = vld [vmem:[%s6 + $0x8] sm:$0xff]
    %v439 = vld [vmem:[%s6 + $0x10] sm:$0x1]
    %441 = vset.pattern.permute.xlu0 0
    %442 = vperm.xlu0 %441, %v437
    %v443 = vpop.permute.xlu0 %442
    %446 = vset.pattern.permute.xlu0 0
    %447 = vperm.xlu0 %446, %v438
    %v448 = vpop.permute.xlu0 %447
    %451 = vset.pattern.permute.xlu0 0
    %452 = vperm.xlu0 %451, %v439
    %v453 = vpop.permute.xlu0 %452
    %455 = vmatpush.msra.mxu0 %v433
    %456 = vmatpush.msra.mxu0 %v432
    %457 = vmatpush.msra.mxu0 %v431
    %458 = vmatpush.msra.mxu0 %v430
    %459 = vmatpush.msra.mxu0 %v429
    %460 = vmatpush.msra.mxu0 %v428
    %461 = vmatpush.msra.mxu0 %v427
    %462 = vmatpush.msra.mxu0 %v426
    %463 = vmatpush.msra.mxu0 %v425
    %464 = vmatpush.msra.mxu0 %v424
    %465 = vmatpush.msra.mxu0 %v423
    %466 = vmatpush.msra.mxu0 %v422
    %467 = vmatpush.msra.mxu0 %v421
    %468 = vmatpush.msra.mxu0 %v420
    %469 = vmatpush.msra.mxu0 %v419
    %470 = vmatpush.msra.mxu0 %v418
    %471 = vmatmul.f32.gmra.mxu0 %v434
    %v472 = vpop.f32.mrf.mxu0
    %v473 = vadd.f32 %v443, %v472
    %474 = vmatmul.f32.gmra.mxu0 %v435
    %v475 = vpop.f32.mrf.mxu0
    %v476 = vadd.f32 %v448, %v475
    %477 = vmatmul.f32.gmra.mxu0 %v436
    %v478 = vpop.f32.mrf.mxu0
    %v479 = vadd.f32 %v453, %v478
    %480 = vdwg.mxu0
    %481 = vst [vmem:[#allocation2] sm:$0xff] %v473
    %482 = vst [vmem:[#allocation2 + $0x8] sm:$0xff] %v476
    %483 = vst [vmem:[#allocation2 + $0x10] sm:$0x1] %v479
    %v484 = vxor.u32 %v473, 2147483648
    %v485 = vxor.u32 %v476, 2147483648
    %v486 = vmul.f32 %v484, 1.442695
    %v487 = vpow.pop %v486
    %v488 = vmul.f32 %v485, 1.442695
    %v489 = vpow.pop %v488
    %v490 = vadd.f32 %v487, 1.0
    %v491 = vadd.f32 %v489, 1.0
    %v492 = vrcp.pop %v490
    %v493 = vmul.f32 %v490, %v492
    %v494 = vsub.f32 1.0, %v493
    %v495 = vmul.f32 %v492, %v494
    %v496 = vadd.f32 %v492, %v495
    %vm497 = vweird.f32 %v490
    %vm498 = vweird.f32 %v492
    %vm499 = vmor %vm497, %vm498
    %v500 = vsel %vm499, %v492, %v496
    %v501 = vand.u32 2147483647, %v490
    %vm502 = vcmp.eq.f32.partialorder %v501, 8.507059e+37
    %v503 = vand.u32 %v490, 2147483648
    %v504 = vor.u32 1.1754944e-38, %v503
    %v505 = vsel %vm502, %v504, %v500
    %v506 = vmul.f32 1.0, %v505
    %v507 = vrcp.pop %v491
    %v508 = vmul.f32 %v491, %v507
    %v509 = vsub.f32 1.0, %v508
    %v510 = vmul.f32 %v507, %v509
    %v511 = vadd.f32 %v507, %v510
    %vm512 = vweird.f32 %v491
    %vm513 = vweird.f32 %v507
    %vm514 = vmor %vm512, %vm513
    %v515 = vsel %vm514, %v507, %v511
    %v516 = vand.u32 2147483647, %v491
    %vm517 = vcmp.eq.f32.partialorder %v516, 8.507059e+37
    %v518 = vand.u32 %v491, 2147483648
    %v519 = vor.u32 1.1754944e-38, %v518
    %v520 = vsel %vm517, %v519, %v515
    %v521 = vmul.f32 1.0, %v520
    %522 = vst [vmem:[#allocation2] sm:$0xc0] %v506
    %523 = vst [vmem:[#allocation2 + $0x8] sm:$0x1f] %v521
    // Predicated region
    $region30: #{tpu_custom_call.1} parent=1 // pred_check
      _
    $region31: #{tpu_custom_call.1} parent=1 // pred_check_branch
      %525 = sbr.rel (0) target = $region33
    $region32: #{tpu_custom_call.1} parent=1 // pred_region
      %527 = vsyncadd [#allocation3], 0
      %s528 = sshll.u32 [#allocation2], 4
      %s529 = int_to_ptr.vmem [resolvable:$true] %s528
      %s530 = sshll.u32 %s7, 4
      %s531 = int_to_ptr.hbm [resolvable:$true] %s530
      %536 = dma.vmem_to_hbm [thread:$0]  %s529, 384, %s531, [#allocation3], 128, 128, 8
    $region33: #{tpu_custom_call.1} parent=1 // pred_fallthru
      _
    // Predicated region
    $region34: #{tpu_custom_call.1} parent=1 // pred_check
      _
    $region35: #{tpu_custom_call.1} parent=1 // pred_check_branch
      %538 = sbr.rel (0) target = $region37
    $region36: #{tpu_custom_call.1} parent=1 // pred_region
      %540 = dma.done [#allocation3], 384
    $region37: #{tpu_custom_call.1} parent=1 // pred_fallthru
      _
    %541 = vsyncpa [#allocation3], 1

// kernel: tpu_custom_call.1
$region0: #{tpu_custom_call.1}
  #allocation0 [shape = 'u32[]', space=smem, size = 0x4, offset = 0x4, fixed_abs, tag = 'smem constant byte address 0x4 - core index']
  #allocation1 [shape = 'u32[72,128]{1,0:T(1,128)}', space=vmem, size = 0x9000, scoped, tag = 'internal scratch']
  %s0 = inlined_call_operand.vmem [shape: f32[20,128], index: 0, kind: input, shape index: {}]
  %s1 = inlined_call_operand.vmem [shape: f32[80,20], index: 1, kind: input, shape index: {}]
  %s2 = inlined_call_operand.vmem [shape: f32[80,1], index: 2, kind: input, shape index: {}]
  %s3 = inlined_call_operand.vmem [shape: f32[128,80], index: 3, kind: input, shape index: {}]
  %s4 = inlined_call_operand.vmem [shape: f32[128,1], index: 4, kind: input, shape index: {}]
  %s5 = inlined_call_operand.vmem [shape: f32[17,128], index: 5, kind: input, shape index: {}]
  %s6 = inlined_call_operand.vmem [shape: f32[17,1], index: 6, kind: input, shape index: {}]
  %s7 = inlined_call_operand.hbm [shape: f32[17,128], index: 7, kind: output, shape index: {}]
  %s8 = sld [smem:[#allocation0]]
  $region38: #{tpu_custom_call.1} parent=0
    _
  %s10 = ssub.s32 1, %s8
  %s11 = scalar_select 0, %s10, %s8
  $region1: #{tpu_custom_call.1} parent=0
    #allocation2 [shape = 'u8[12288]{0}', space=vmem, size = 0x3000, scoped, tag = 'output window, operand 0, single buffered']
    #allocation3 [shape = 's32[1]{0}', space=sflag, size = 0x4, scoped, tag = 'scoped memory for tpu_custom_call.1']
    %12 = vsyncpa [#allocation3], 0
    // Predicated region
    $region2: #{tpu_custom_call.1} parent=1 // pred_check
      _
    $region3: #{tpu_custom_call.1} parent=1 // pred_check_branch
      %14 = sbr.rel (0) target = $region5
    $region4: #{tpu_custom_call.1} parent=1 // pred_region
      _
    $region5: #{tpu_custom_call.1} parent=1 // pred_fallthru
      _
    // Predicated region
    $region6: #{tpu_custom_call.1} parent=1 // pred_check
      _
    $region7: #{tpu_custom_call.1} parent=1 // pred_check_branch
      %16 = sbr.rel (0) target = $region9
    $region8: #{tpu_custom_call.1} parent=1 // pred_region
      _
    $region9: #{tpu_custom_call.1} parent=1 // pred_fallthru
      _
    // Predicated region
    $region10: #{tpu_custom_call.1} parent=1 // pred_check
      _
    $region11: #{tpu_custom_call.1} parent=1 // pred_check_branch
      %18 = sbr.rel (0) target = $region13
    $region12: #{tpu_custom_call.1} parent=1 // pred_region
      _
    $region13: #{tpu_custom_call.1} parent=1 // pred_fallthru
      _
    // Predicated region
    $region14: #{tpu_custom_call.1} parent=1 // pred_check
      _
    $region15: #{tpu_custom_call.1} parent=1 // pred_check_branch
      %20 = sbr.rel (0) target = $region17
    $region16: #{tpu_custom_call.1} parent=1 // pred_region
      _
    $region17: #{tpu_custom_call.1} parent=1 // pred_fallthru
      _
    // Predicated region
    $region18: #{tpu_custom_call.1} parent=1 // pred_check
      _
    $region19: #{tpu_custom_call.1} parent=1 // pred_check_branch
      %22 = sbr.rel (0) target = $region21
    $region20: #{tpu_custom_call.1} parent=1 // pred_region
      _
    $region21: #{tpu_custom_call.1} parent=1 // pred_fallthru
      _
    // Predicated region
    $region22: #{tpu_custom_call.1} parent=1 // pred_check
      _
    $region23: #{tpu_custom_call.1} parent=1 // pred_check_branch
      %24 = sbr.rel (0) target = $region25
    $region24: #{tpu_custom_call.1} parent=1 // pred_region
      _
    $region25: #{tpu_custom_call.1} parent=1 // pred_fallthru
      _
    // Predicated region
    $region26: #{tpu_custom_call.1} parent=1 // pred_check
      _
    $region27: #{tpu_custom_call.1} parent=1 // pred_check_branch
      %26 = sbr.rel (0) target = $region29
    $region28: #{tpu_custom_call.1} parent=1 // pred_region
      _
    $region29: #{tpu_custom_call.1} parent=1 // pred_fallthru
      _
    %v27 = vld [vmem:[%s1] sm:$0xff]
    %v28 = vld [vmem:[%s1 + $0x8] sm:$0xff]
    %v29 = vld [vmem:[%s1 + $0x10] sm:$0xff]
    %v30 = vld [vmem:[%s1 + $0x18] sm:$0xff]
    %v31 = vld [vmem:[%s1 + $0x20] sm:$0xff]
    %v32 = vld [vmem:[%s1 + $0x28] sm:$0xff]
    %v33 = vld [vmem:[%s1 + $0x30] sm:$0xff]
    %v34 = vld [vmem:[%s1 + $0x38] sm:$0xff]
    %v35 = vld [vmem:[%s1 + $0x40] sm:$0xff]
    %v36 = vld [vmem:[%s1 + $0x48] sm:$0xff]
    %v37 = vld [vmem:[%s0] sm:$0xff]
    %v38 = vld [vmem:[%s0 + $0x8] sm:$0xff]
    %v39 = vld [vmem:[%s0 + $0x10] sm:$0xf]
    %v40 = vld [vmem:[%s2] sm:$0xff]
    %v41 = vld [vmem:[%s2 + $0x8] sm:$0xff]
    %v42 = vld [vmem:[%s2 + $0x10] sm:$0xff]
    %v43 = vld [vmem:[%s2 + $0x18] sm:$0xff]
    %v44 = vld [vmem:[%s2 + $0x20] sm:$0xff]
    %v45 = vld [vmem:[%s2 + $0x28] sm:$0xff]
    %v46 = vld [vmem:[%s2 + $0x30] sm:$0xff]
    %v47 = vld [vmem:[%s2 + $0x38] sm:$0xff]
    %v48 = vld [vmem:[%s2 + $0x40] sm:$0xff]
    %v49 = vld [vmem:[%s2 + $0x48] sm:$0xff]
    %51 = vset.pattern.permute.xlu0 0
    %52 = vperm.xlu0 %51, %v40
    %v53 = vpop.permute.xlu0 %52
    %56 = vset.pattern.permute.xlu0 0
    %57 = vperm.xlu0 %56, %v41
    %v58 = vpop.permute.xlu0 %57
    %61 = vset.pattern.permute.xlu0 0
    %62 = vperm.xlu0 %61, %v42
    %v63 = vpop.permute.xlu0 %62
    %66 = vset.pattern.permute.xlu0 0
    %67 = vperm.xlu0 %66, %v43
    %v68 = vpop.permute.xlu0 %67
    %71 = vset.pattern.permute.xlu0 0
    %72 = vperm.xlu0 %71, %v44
    %v73 = vpop.permute.xlu0 %72
    %76 = vset.pattern.permute.xlu0 0
    %77 = vperm.xlu0 %76, %v45
    %v78 = vpop.permute.xlu0 %77
    %81 = vset.pattern.permute.xlu0 0
    %82 = vperm.xlu0 %81, %v46
    %v83 = vpop.permute.xlu0 %82
    %86 = vset.pattern.permute.xlu0 0
    %87 = vperm.xlu0 %86, %v47
    %v88 = vpop.permute.xlu0 %87
    %91 = vset.pattern.permute.xlu0 0
    %92 = vperm.xlu0 %91, %v48
    %v93 = vpop.permute.xlu0 %92
    %96 = vset.pattern.permute.xlu0 0
    %97 = vperm.xlu0 %96, %v49
    %v98 = vpop.permute.xlu0 %97
    %vm100 = vcmask 162816
    %v102 = vsel %vm100, %v27, 0
    %v105 = vsel %vm100, %v28, 0
    %v108 = vsel %vm100, %v29, 0
    %v111 = vsel %vm100, %v30, 0
    %v114 = vsel %vm100, %v31, 0
    %v117 = vsel %vm100, %v32, 0
    %v120 = vsel %vm100, %v33, 0
    %v123 = vsel %vm100, %v34, 0
    %v126 = vsel %vm100, %v35, 0
    %v129 = vsel %vm100, %v36, 0
    %vm131 = vcmask 1043456
    %v133 = vsel %vm131, %v39, 0
    %135 = vmatpush.msra.mxu0 0.0
    %136 = vmatpush.msra.mxu0 0.0
    %137 = vmatpush.msra.mxu0 0.0
    %138 = vmatpush.msra.mxu0 0.0
    %139 = vmatpush.msra.mxu0 0.0
    %140 = vmatpush.msra.mxu0 0.0
    %141 = vmatpush.msra.mxu0 0.0
    %142 = vmatpush.msra.mxu0 0.0
    %143 = vmatpush.msra.mxu0 0.0
    %144 = vmatpush.msra.mxu0 0.0
    %145 = vmatpush.msra.mxu0 0.0
    %146 = vmatpush.msra.mxu0 0.0
    %147 = vmatpush.msra.mxu0 0.0
    %148 = vmatpush.msra.mxu0 %v133
    %149 = vmatpush.msra.mxu0 %v38
    %150 = vmatpush.msra.mxu0 %v37
    %151 = vmatmul.f32.gmra.mxu0 %v102
    %v152 = vpop.f32.mrf.mxu0
    %v153 = vadd.f32 %v53, %v152
    %154 = vmatmul.f32.gmra.mxu0 %v105
    %v155 = vpop.f32.mrf.mxu0
    %v156 = vadd.f32 %v58, %v155
    %157 = vmatmul.f32.gmra.mxu0 %v108
    %v158 = vpop.f32.mrf.mxu0
    %v159 = vadd.f32 %v63, %v158
    %160 = vmatmul.f32.gmra.mxu0 %v111
    %v161 = vpop.f32.mrf.mxu0
    %v162 = vadd.f32 %v68, %v161
    %163 = vmatmul.f32.gmra.mxu0 %v114
    %v164 = vpop.f32.mrf.mxu0
    %v165 = vadd.f32 %v73, %v164
    %166 = vmatmul.f32.gmra.mxu0 %v117
    %v167 = vpop.f32.mrf.mxu0
    %v168 = vadd.f32 %v78, %v167
    %169 = vmatmul.f32.gmra.mxu0 %v120
    %v170 = vpop.f32.mrf.mxu0
    %v171 = vadd.f32 %v83, %v170
    %172 = vmatmul.f32.gmra.mxu0 %v123
    %v173 = vpop.f32.mrf.mxu0
    %v174 = vadd.f32 %v88, %v173
    %175 = vmatmul.f32.gmra.mxu0 %v126
    %v176 = vpop.f32.mrf.mxu0
    %v177 = vadd.f32 %v93, %v176
    %178 = vmatmul.f32.gmra.mxu0 %v129
    %v179 = vpop.f32.mrf.mxu0
    %v180 = vadd.f32 %v98, %v179
    %181 = vdwg.mxu0
    %v182 = vmax.f32 %v153, 0.0
    %v183 = vmax.f32 %v156, 0.0
    %v184 = vmax.f32 %v159, 0.0
    %v185 = vmax.f32 %v162, 0.0
    %v186 = vmax.f32 %v165, 0.0
    %v187 = vmax.f32 %v168, 0.0
    %v188 = vmax.f32 %v171, 0.0
    %v189 = vmax.f32 %v174, 0.0
    %v190 = vmax.f32 %v177, 0.0
    %v191 = vmax.f32 %v180, 0.0
    %v192 = vld [vmem:[%s3] sm:$0xff]
    %v193 = vld [vmem:[%s3 + $0x8] sm:$0xff]
    %v194 = vld [vmem:[%s3 + $0x10] sm:$0xff]
    %v195 = vld [vmem:[%s3 + $0x18] sm:$0xff]
    %v196 = vld [vmem:[%s3 + $0x20] sm:$0xff]
    %v197 = vld [vmem:[%s3 + $0x28] sm:$0xff]
    %v198 = vld [vmem:[%s3 + $0x30] sm:$0xff]
    %v199 = vld [vmem:[%s3 + $0x38] sm:$0xff]
    %v200 = vld [vmem:[%s3 + $0x40] sm:$0xff]
    %v201 = vld [vmem:[%s3 + $0x48] sm:$0xff]
    %v202 = vld [vmem:[%s3 + $0x50] sm:$0xff]
    %v203 = vld [vmem:[%s3 + $0x58] sm:$0xff]
    %v204 = vld [vmem:[%s3 + $0x60] sm:$0xff]
    %v205 = vld [vmem:[%s3 + $0x68] sm:$0xff]
    %v206 = vld [vmem:[%s3 + $0x70] sm:$0xff]
    %v207 = vld [vmem:[%s3 + $0x78] sm:$0xff]
    %v208 = vld [vmem:[%s4] sm:$0xff]
    %v209 = vld [vmem:[%s4 + $0x8] sm:$0xff]
    %v210 = vld [vmem:[%s4 + $0x10] sm:$0xff]
    %v211 = vld [vmem:[%s4 + $0x18] sm:$0xff]
    %v212 = vld [vmem:[%s4 + $0x20] sm:$0xff]
    %v213 = vld [vmem:[%s4 + $0x28] sm:$0xff]
    %v214 = vld [vmem:[%s4 + $0x30] sm:$0xff]
    %v215 = vld [vmem:[%s4 + $0x38] sm:$0xff]
    %v216 = vld [vmem:[%s4 + $0x40] sm:$0xff]
    %v217 = vld [vmem:[%s4 + $0x48] sm:$0xff]
    %v218 = vld [vmem:[%s4 + $0x50] sm:$0xff]
    %v219 = vld [vmem:[%s4 + $0x58] sm:$0xff]
    %v220 = vld [vmem:[%s4 + $0x60] sm:$0xff]
    %v221 = vld [vmem:[%s4 + $0x68] sm:$0xff]
    %v222 = vld [vmem:[%s4 + $0x70] sm:$0xff]
    %v223 = vld [vmem:[%s4 + $0x78] sm:$0xff]
    %225 = vset.pattern.permute.xlu0 0
    %226 = vperm.xlu0 %225, %v208
    %v227 = vpop.permute.xlu0 %226
    %230 = vset.pattern.permute.xlu0 0
    %231 = vperm.xlu0 %230, %v209
    %v232 = vpop.permute.xlu0 %231
    %235 = vset.pattern.permute.xlu0 0
    %236 = vperm.xlu0 %235, %v210
    %v237 = vpop.permute.xlu0 %236
    %240 = vset.pattern.permute.xlu0 0
    %241 = vperm.xlu0 %240, %v211
    %v242 = vpop.permute.xlu0 %241
    %245 = vset.pattern.permute.xlu0 0
    %246 = vperm.xlu0 %245, %v212
    %v247 = vpop.permute.xlu0 %246
    %250 = vset.pattern.permute.xlu0 0
    %251 = vperm.xlu0 %250, %v213
    %v252 = vpop.permute.xlu0 %251
    %255 = vset.pattern.permute.xlu0 0
    %256 = vperm.xlu0 %255, %v214
    %v257 = vpop.permute.xlu0 %256
    %260 = vset.pattern.permute.xlu0 0
    %261 = vperm.xlu0 %260, %v215
    %v262 = vpop.permute.xlu0 %261
    %265 = vset.pattern.permute.xlu0 0
    %266 = vperm.xlu0 %265, %v216
    %v267 = vpop.permute.xlu0 %266
    %270 = vset.pattern.permute.xlu0 0
    %271 = vperm.xlu0 %270, %v217
    %v272 = vpop.permute.xlu0 %271
    %275 = vset.pattern.permute.xlu0 0
    %276 = vperm.xlu0 %275, %v218
    %v277 = vpop.permute.xlu0 %276
    %280 = vset.pattern.permute.xlu0 0
    %281 = vperm.xlu0 %280, %v219
    %v282 = vpop.permute.xlu0 %281
    %285 = vset.pattern.permute.xlu0 0
    %286 = vperm.xlu0 %285, %v220
    %v287 = vpop.permute.xlu0 %286
    %290 = vset.pattern.permute.xlu0 0
    %291 = vperm.xlu0 %290, %v221
    %v292 = vpop.permute.xlu0 %291
    %295 = vset.pattern.permute.xlu0 0
    %296 = vperm.xlu0 %295, %v222
    %v297 = vpop.permute.xlu0 %296
    %300 = vset.pattern.permute.xlu0 0
    %301 = vperm.xlu0 %300, %v223
    %v302 = vpop.permute.xlu0 %301
    %vm304 = vcmask 654336
    %v306 = vsel %vm304, %v192, 0
    %v309 = vsel %vm304, %v193, 0
    %v312 = vsel %vm304, %v194, 0
    %v315 = vsel %vm304, %v195, 0
    %v318 = vsel %vm304, %v196, 0
    %v321 = vsel %vm304, %v197, 0
    %v324 = vsel %vm304, %v198, 0
    %v327 = vsel %vm304, %v199, 0
    %v330 = vsel %vm304, %v200, 0
    %v333 = vsel %vm304, %v201, 0
    %v336 = vsel %vm304, %v202, 0
    %v339 = vsel %vm304, %v203, 0
    %v342 = vsel %vm304, %v204, 0
    %v345 = vsel %vm304, %v205, 0
    %v348 = vsel %vm304, %v206, 0
    %v351 = vsel %vm304, %v207, 0
    %353 = vmatpush.msra.mxu0 0.0
    %354 = vmatpush.msra.mxu0 0.0
    %355 = vmatpush.msra.mxu0 0.0
    %356 = vmatpush.msra.mxu0 0.0
    %357 = vmatpush.msra.mxu0 0.0
    %358 = vmatpush.msra.mxu0 0.0
    %359 = vmatpush.msra.mxu0 %v191
    %360 = vmatpush.msra.mxu0 %v190
    %361 = vmatpush.msra.mxu0 %v189
    %362 = vmatpush.msra.mxu0 %v188
    %363 = vmatpush.msra.mxu0 %v187
    %364 = vmatpush.msra.mxu0 %v186
    %365 = vmatpush.msra.mxu0 %v185
    %366 = vmatpush.msra.mxu0 %v184
    %367 = vmatpush.msra.mxu0 %v183
    %368 = vmatpush.msra.mxu0 %v182
    %369 = vmatmul.f32.gmra.mxu0 %v306
    %v370 = vpop.f32.mrf.mxu0
    %v371 = vadd.f32 %v227, %v370
    %372 = vmatmul.f32.gmra.mxu0 %v309
    %v373 = vpop.f32.mrf.mxu0
    %v374 = vadd.f32 %v232, %v373
    %375 = vmatmul.f32.gmra.mxu0 %v312
    %v376 = vpop.f32.mrf.mxu0
    %v377 = vadd.f32 %v237, %v376
    %378 = vmatmul.f32.gmra.mxu0 %v315
    %v379 = vpop.f32.mrf.mxu0
    %v380 = vadd.f32 %v242, %v379
    %381 = vmatmul.f32.gmra.mxu0 %v318
    %v382 = vpop.f32.mrf.mxu0
    %v383 = vadd.f32 %v247, %v382
    %384 = vmatmul.f32.gmra.mxu0 %v321
    %v385 = vpop.f32.mrf.mxu0
    %v386 = vadd.f32 %v252, %v385
    %387 = vmatmul.f32.gmra.mxu0 %v324
    %v388 = vpop.f32.mrf.mxu0
    %v389 = vadd.f32 %v257, %v388
    %390 = vmatmul.f32.gmra.mxu0 %v327
    %v391 = vpop.f32.mrf.mxu0
    %v392 = vadd.f32 %v262, %v391
    %393 = vmatmul.f32.gmra.mxu0 %v330
    %v394 = vpop.f32.mrf.mxu0
    %v395 = vadd.f32 %v267, %v394
    %396 = vmatmul.f32.gmra.mxu0 %v333
    %v397 = vpop.f32.mrf.mxu0
    %v398 = vadd.f32 %v272, %v397
    %399 = vmatmul.f32.gmra.mxu0 %v336
    %v400 = vpop.f32.mrf.mxu0
    %v401 = vadd.f32 %v277, %v400
    %402 = vmatmul.f32.gmra.mxu0 %v339
    %v403 = vpop.f32.mrf.mxu0
    %v404 = vadd.f32 %v282, %v403
    %405 = vmatmul.f32.gmra.mxu0 %v342
    %v406 = vpop.f32.mrf.mxu0
    %v407 = vadd.f32 %v287, %v406
    %408 = vmatmul.f32.gmra.mxu0 %v345
    %v409 = vpop.f32.mrf.mxu0
    %v410 = vadd.f32 %v292, %v409
    %411 = vmatmul.f32.gmra.mxu0 %v348
    %v412 = vpop.f32.mrf.mxu0
    %v413 = vadd.f32 %v297, %v412
    %414 = vmatmul.f32.gmra.mxu0 %v351
    %v415 = vpop.f32.mrf.mxu0
    %v416 = vadd.f32 %v302, %v415
    %417 = vdwg.mxu0
    %v418 = vmax.f32 %v371, 0.0
    %v419 = vmax.f32 %v374, 0.0
    %v420 = vmax.f32 %v377, 0.0
    %v421 = vmax.f32 %v380, 0.0
    %v422 = vmax.f32 %v383, 0.0
    %v423 = vmax.f32 %v386, 0.0
    %v424 = vmax.f32 %v389, 0.0
    %v425 = vmax.f32 %v392, 0.0
    %v426 = vmax.f32 %v395, 0.0
    %v427 = vmax.f32 %v398, 0.0
    %v428 = vmax.f32 %v401, 0.0
    %v429 = vmax.f32 %v404, 0.0
    %v430 = vmax.f32 %v407, 0.0
    %v431 = vmax.f32 %v410, 0.0
    %v432 = vmax.f32 %v413, 0.0
    %v433 = vmax.f32 %v416, 0.0
    %v434 = vld [vmem:[%s5] sm:$0xff]
    %v435 = vld [vmem:[%s5 + $0x8] sm:$0xff]
    %v436 = vld [vmem:[%s5 + $0x10] sm:$0x1]
    %v437 = vld [vmem:[%s6] sm:$0xff]
    %v438 = vld [vmem:[%s6 + $0x8] sm:$0xff]
    %v439 = vld [vmem:[%s6 + $0x10] sm:$0x1]
    %441 = vset.pattern.permute.xlu0 0
    %442 = vperm.xlu0 %441, %v437
    %v443 = vpop.permute.xlu0 %442
    %446 = vset.pattern.permute.xlu0 0
    %447 = vperm.xlu0 %446, %v438
    %v448 = vpop.permute.xlu0 %447
    %451 = vset.pattern.permute.xlu0 0
    %452 = vperm.xlu0 %451, %v439
    %v453 = vpop.permute.xlu0 %452
    %455 = vmatpush.msra.mxu0 %v433
    %456 = vmatpush.msra.mxu0 %v432
    %457 = vmatpush.msra.mxu0 %v431
    %458 = vmatpush.msra.mxu0 %v430
    %459 = vmatpush.msra.mxu0 %v429
    %460 = vmatpush.msra.mxu0 %v428
    %461 = vmatpush.msra.mxu0 %v427
    %462 = vmatpush.msra.mxu0 %v426
    %463 = vmatpush.msra.mxu0 %v425
    %464 = vmatpush.msra.mxu0 %v424
    %465 = vmatpush.msra.mxu0 %v423
    %466 = vmatpush.msra.mxu0 %v422
    %467 = vmatpush.msra.mxu0 %v421
    %468 = vmatpush.msra.mxu0 %v420
    %469 = vmatpush.msra.mxu0 %v419
    %470 = vmatpush.msra.mxu0 %v418
    %471 = vmatmul.f32.gmra.mxu0 %v434
    %v472 = vpop.f32.mrf.mxu0
    %v473 = vadd.f32 %v443, %v472
    %474 = vmatmul.f32.gmra.mxu0 %v435
    %v475 = vpop.f32.mrf.mxu0
    %v476 = vadd.f32 %v448, %v475
    %477 = vmatmul.f32.gmra.mxu0 %v436
    %v478 = vpop.f32.mrf.mxu0
    %v479 = vadd.f32 %v453, %v478
    %480 = vdwg.mxu0
    %481 = vst [vmem:[#allocation2] sm:$0xff] %v473
    %482 = vst [vmem:[#allocation2 + $0x8] sm:$0xff] %v476
    %483 = vst [vmem:[#allocation2 + $0x10] sm:$0x1] %v479
    %v484 = vxor.u32 %v473, 2147483648
    %v485 = vxor.u32 %v476, 2147483648
    %v486 = vmul.f32 %v484, 1.442695
    %v487 = vpow.pop %v486
    %v488 = vmul.f32 %v485, 1.442695
    %v489 = vpow.pop %v488
    %v490 = vadd.f32 %v487, 1.0
    %v491 = vadd.f32 %v489, 1.0
    %v492 = vrcp.pop %v490
    %v493 = vmul.f32 %v490, %v492
    %v494 = vsub.f32 1.0, %v493
    %v495 = vmul.f32 %v492, %v494
    %v496 = vadd.f32 %v492, %v495
    %vm497 = vweird.f32 %v490
    %vm498 = vweird.f32 %v492
    %vm499 = vmor %vm497, %vm498
    %v500 = vsel %vm499, %v492, %v496
    %v501 = vand.u32 2147483647, %v490
    %vm502 = vcmp.eq.f32.partialorder %v501, 8.507059e+37
    %v503 = vand.u32 %v490, 2147483648
    %v504 = vor.u32 1.1754944e-38, %v503
    %v505 = vsel %vm502, %v504, %v500
    %v506 = vmul.f32 1.0, %v505
    %v507 = vrcp.pop %v491
    %v508 = vmul.f32 %v491, %v507
    %v509 = vsub.f32 1.0, %v508
    %v510 = vmul.f32 %v507, %v509
    %v511 = vadd.f32 %v507, %v510
    %vm512 = vweird.f32 %v491
    %vm513 = vweird.f32 %v507
    %vm514 = vmor %vm512, %vm513
    %v515 = vsel %vm514, %v507, %v511
    %v516 = vand.u32 2147483647, %v491
    %vm517 = vcmp.eq.f32.partialorder %v516, 8.507059e+37
    %v518 = vand.u32 %v491, 2147483648
    %v519 = vor.u32 1.1754944e-38, %v518
    %v520 = vsel %vm517, %v519, %v515
    %v521 = vmul.f32 1.0, %v520
    %522 = vst [vmem:[#allocation2] sm:$0xc0] %v506
    %523 = vst [vmem:[#allocation2 + $0x8] sm:$0x1f] %v521
    // Predicated region
    $region30: #{tpu_custom_call.1} parent=1 // pred_check
      _
    $region31: #{tpu_custom_call.1} parent=1 // pred_check_branch
      %525 = sbr.rel (0) target = $region33
    $region32: #{tpu_custom_call.1} parent=1 // pred_region
      %527 = vsyncadd [#allocation3], 0
      %s528 = sshll.u32 [#allocation2], 4
      %s529 = int_to_ptr.vmem [resolvable:$true] %s528
      %s530 = sshll.u32 %s7, 4
      %s531 = int_to_ptr.hbm [resolvable:$true] %s530
      %536 = dma.vmem_to_hbm [thread:$0]  %s529, 384, %s531, [#allocation3], 128, 128, 8
    $region33: #{tpu_custom_call.1} parent=1 // pred_fallthru
      _
    // Predicated region
    $region34: #{tpu_custom_call.1} parent=1 // pred_check
      _
    $region35: #{tpu_custom_call.1} parent=1 // pred_check_branch
      %538 = sbr.rel (0) target = $region37
    $region36: #{tpu_custom_call.1} parent=1 // pred_region
      %540 = dma.done [#allocation3], 384
    $region37: #{tpu_custom_call.1} parent=1 // pred_fallthru
      _
    %541 = vsyncpa [#allocation3], 1

</llo_original>
